<compile_context>
chip_gen: v5e
topology: v5e:2x2
jax: 0.10.0
libtpu: 0.0.40
codegen_flags: <defaults>
</compile_context>

<pallas_src>
import jax
import jax.numpy as jnp
from jax.experimental import pallas as pl
from jax.experimental.pallas import tpu as pltpu


# ----------------------------- Pallas kernel -------------------------------

def _make_block_kernel(c_in, c_out, wop, l_valid, g,
                       tap1_plane, tap1_off, sc_plane, has_proj):
    """One grid step == the whole BasicBlock for one image.

    planes_ref : (n_planes*c_in, l_img) bf16 input planes, guarded flat layout
    w1_ref     : (9*c_out, c_in)  bf16, BN1 scale folded, tap-major rows
    w2_ref     : (9*c_out, c_out) bf16, BN2 scale folded
    b1/b2_ref  : (c_out, 1) f32
    mask_ref   : (1, l_valid) f32, 1 on interior, 0 on the conv pad ring
    ws/bs_ref  : (c_out, c_in) bf16 / (c_out, 1) f32   (projection shortcut only)
    o_ref      : (c_out, l_valid) f32 output in padded layout (ring = don't care)
    h1_ref     : (c_out, l_img) bf16 VMEM scratch for the intermediate activation
    """
    # conv2 is always a stride-1 3x3 on h1's padded layout.
    tap2_off = [(dy - 1) * wop + (dx - 1) for dy in range(3) for dx in range(3)]

    def kernel(planes_ref, w1_ref, b1_ref, w2_ref, b2_ref, mask_ref, *rest):
        if has_proj:
            ws_ref, bs_ref, o_ref, h1_ref = rest
        else:
            o_ref, h1_ref = rest

        # ---- conv1 (3x3, stride folded into the plane layout) + BN1 + ReLU ----
        acc1 = jnp.zeros((c_out, l_valid), jnp.float32)
        for t in range(9):
            p = tap1_plane[t]
            s = g + tap1_off[t]
            a = planes_ref[p * c_in:(p + 1) * c_in, s:s + l_valid]        # bf16
            w = w1_ref[t * c_out:(t + 1) * c_out, :]                      # bf16
            acc1 = acc1 + jnp.dot(w, a, preferred_element_type=jnp.float32)
        h1 = jnp.maximum(acc1 + b1_ref[...], 0.0) * mask_ref[...]         # ring->0
        h1_ref[...] = jnp.zeros_like(h1_ref)                              # zero guards
        h1_ref[:, g:g + l_valid] = h1.astype(h1_ref.dtype)

        # ---- conv2 (3x3, stride 1 on the padded h1 layout) + BN2 ----
        acc2 = jnp.zeros((c_out, l_valid), jnp.float32)
        for t in range(9):
            s = g + tap2_off[t]
            a = h1_ref[:, s:s + l_valid]                                  # bf16
            w = w2_ref[t * c_out:(t + 1) * c_out, :]
            acc2 = acc2 + jnp.dot(w, a, preferred_element_type=jnp.float32)
        y = acc2 + b2_ref[...]

        # ---- shortcut: identity, or fused 1x1-conv + BN on a resident plane ----
        sc = planes_ref[sc_plane * c_in:(sc_plane + 1) * c_in, g:g + l_valid]
        if has_proj:
            y = y + jnp.dot(ws_ref[...], sc,
                            preferred_element_type=jnp.float32) + bs_ref[...]
        else:
            y = y + sc.astype(jnp.float32)        # identity: c_in == c_out

        o_ref[...] = jnp.maximum(y, 0.0)

    return kernel


# ------------------------------- JAX glue ----------------------------------

def fold_bn(gamma, beta, mean, var, eps=1e-5):
    scale = gamma / jnp.sqrt(var + eps)
    bias = beta - mean * scale
    return scale, bias


def _fold_w(w_oihw, scale):
    """(O,I,kh,kw) * per-O BN scale -> (kh*kw*O, I) tap-major matrix (f32)."""
    o, i, kh, kw = w_oihw.shape
    wf = w_oihw * scale[:, None, None, None]
    return wf.transpose(2, 3, 0, 1).reshape(kh * kw * o, i)


def basic_block_pallas(params, x, stride):
    n, c_in, h, w = x.shape
    c_out = params['w1'].shape[0]
    assert stride in (1, 2)
    ho = (h - 1) // stride + 1
    wo = (w - 1) // stride + 1
    hop, wop = ho + 2, wo + 2      # conv-output spatial dims + pad ring
    l_valid = hop * wop            # per-image padded-flat layout length
    g = wop + 1                    # guard so every tap's flat shift stays in-bounds
    l_img = l_valid + 2 * g

    # ---- fold BN scales into the conv weights (f32), then cast bf16 ----
    s1, b1 = fold_bn(**params['bn1'])
    s2, b2 = fold_bn(**params['bn2'])
    w1m = _fold_w(params['w1'], s1).astype(jnp.bfloat16)      # (9*c_out, c_in)
    w2m = _fold_w(params['w2'], s2).astype(jnp.bfloat16)      # (9*c_out, c_out)
    b1 = b1.reshape(c_out, 1).astype(jnp.float32)
    b2 = b2.reshape(c_out, 1).astype(jnp.float32)

    has_proj = 'ws' in params
    proj_args = []
    if has_proj:
        ss, bs = fold_bn(**params['bns'])
        wsm = (params['ws'][:, :, 0, 0] * ss[:, None]).astype(jnp.bfloat16)
        proj_args = [wsm, bs.reshape(c_out, 1).astype(jnp.float32)]

    # ---- build per-image input planes in the conv-output padded layout ----
    if stride == 1:
        # One plane: x zero-padded by 1.  Tap (dy,dx) = flat shift (dy-1)*wop+(dx-1).
        xp = jnp.pad(x, ((0, 0), (0, 0), (1, 1), (1, 1)))     # (N, C, hop, wop)
        planes = xp.reshape(n, c_in, l_valid)
        tap1_plane = [0] * 9
        tap1_off = [(dy - 1) * wop + (dx - 1)
                    for dy in range(3) for dx in range(3)]
        sc_plane = 0                # 1x1 stride-1 shortcut reads xpad[y', x']
        n_planes = 1
    else:
        # Parity decomposition: Q[py,px][i,j] = xpad[2i+py-2, 2j+px-2], so a
        # stride-2 tap (dy,dx) becomes a unit flat shift ((dy//2)*wop + dx//2)
        # of plane (2*(dy%2)+(dx%2)) in the output's padded layout.
        pad_b = 2 * hop - 3 - h
        pad_r = 2 * wop - 3 - w
        xbig = jnp.pad(x, ((0, 0), (0, 0), (3, pad_b), (3, pad_r)))
        qs = []
        for py in range(2):
            for px in range(2):
                q = xbig[:, :, py:py + 2 * hop:2, px:px + 2 * wop:2]
                qs.append(q[:, :, :hop, :wop])
        planes = jnp.stack(qs, axis=1).reshape(n, 4 * c_in, l_valid)
        tap1_plane = [2 * (dy % 2) + (dx % 2)
                      for dy in range(3) for dx in range(3)]
        tap1_off = [(dy // 2) * wop + (dx // 2)
                    for dy in range(3) for dx in range(3)]
        sc_plane = 3                # Q[1,1][y',x'] == x[2*yo, 2*xo]
        n_planes = 4
    planes = jnp.pad(planes, ((0, 0), (0, 0), (g, g))).astype(jnp.bfloat16)

    # interior-validity mask (zero on the conv pad ring), shared by all images
    mask = jnp.zeros((hop, wop), jnp.float32).at[1:ho + 1, 1:wo + 1].set(1.0)
    mask = mask.reshape(1, l_valid)

    kernel = _make_block_kernel(c_in, c_out, wop, l_valid, g,
                                tap1_plane, tap1_off, sc_plane, has_proj)

    rows_p = n_planes * c_in
    in_specs = [
        pl.BlockSpec((None, rows_p, l_img), lambda i: (i, 0, 0)),   # planes/image
        pl.BlockSpec((9 * c_out, c_in), lambda i: (0, 0)),          # w1 (resident)
        pl.BlockSpec((c_out, 1), lambda i: (0, 0)),                 # b1
        pl.BlockSpec((9 * c_out, c_out), lambda i: (0, 0)),         # w2
        pl.BlockSpec((c_out, 1), lambda i: (0, 0)),                 # b2
        pl.BlockSpec((1, l_valid), lambda i: (0, 0)),               # ring mask
    ]
    if has_proj:
        in_specs += [pl.BlockSpec((c_out, c_in), lambda i: (0, 0)),  # ws
                     pl.BlockSpec((c_out, 1), lambda i: (0, 0))]     # bs

    flops = 2 * n * l_valid * (9 * c_out * c_in + 9 * c_out * c_out
                               + (c_out * c_in if has_proj else 0))
    bytes_accessed = int(planes.size * 2 + w1m.size * 2 + w2m.size * 2
                         + (b1.size + b2.size + mask.size) * 4
                         + (proj_args[0].size * 2 + proj_args[1].size * 4
                            if has_proj else 0)
                         + n * c_out * l_valid * 4)
    cost = pl.CostEstimate(flops=flops, transcendentals=0,
                           bytes_accessed=bytes_accessed)

    out_pad = pl.pallas_call(
        kernel,
        out_shape=jax.ShapeDtypeStruct((n, c_out, l_valid), jnp.float32),
        grid=(n,),
        in_specs=in_specs,
        out_specs=pl.BlockSpec((None, c_out, l_valid), lambda i: (i, 0, 0)),
        scratch_shapes=[pltpu.VMEM((c_out, l_img), jnp.bfloat16)],
        compiler_params=pltpu.CompilerParams(
            dimension_semantics=("parallel",),
            vmem_limit_bytes=32 * 1024 * 1024),
        cost_estimate=cost,
    )(planes, w1m, b1, w2m, b2, mask, *proj_args)

    # strip the pad ring; result is already NCHW (no final transpose needed)
    return out_pad.reshape(n, c_out, hop, wop)[:, :, 1:ho + 1, 1:wo + 1]


# ----------------------------- params / ref --------------------------------

def init_basic_block_params(key, in_channels, out_channels, stride):
    ks = jax.random.split(key, 16)

    def bn_params(k0, k1, k2, k3, ch):
        return dict(
            gamma=1.0 + 0.1 * jax.random.normal(k0, (ch,), jnp.float32),
            beta=0.1 * jax.random.normal(k1, (ch,), jnp.float32),
            mean=0.1 * jax.random.normal(k2, (ch,), jnp.float32),
            var=jnp.abs(jax.random.normal(k3, (ch,), jnp.float32)) + 0.5)

    p = {
        'w1': 0.1 * jax.random.normal(
            ks[0], (out_channels, in_channels, 3, 3), jnp.float32),
        'bn1': bn_params(ks[1], ks[2], ks[3], ks[4], out_channels),
        'w2': 0.1 * jax.random.normal(
            ks[5], (out_channels, out_channels, 3, 3), jnp.float32),
        'bn2': bn_params(ks[6], ks[7], ks[8], ks[9], out_channels),
    }
    if stride != 1 or in_channels != out_channels:
        p['ws'] = 0.1 * jax.random.normal(
            ks[10], (out_channels, in_channels, 1, 1), jnp.float32)
        p['bns'] = bn_params(ks[11], ks[12], ks[13], ks[14], out_channels)
    return p


def basic_block_ref(params, x, stride):
    def conv(x, w, s, p):
        return jax.lax.conv_general_dilated(
            x, w, (s, s), [(p, p), (p, p)],
            dimension_numbers=('NCHW', 'OIHW', 'NCHW'))

    def bn(x, d, eps=1e-5):
        s = d['gamma'] / jnp.sqrt(d['var'] + eps)
        b = d['beta'] - d['mean'] * s
        return x * s[None, :, None, None] + b[None, :, None, None]

    y = jnp.maximum(bn(conv(x, params['w1'], stride, 1), params['bn1']), 0.0)
    y = bn(conv(y, params['w2'], 1, 1), params['bn2'])
    if 'ws' in params:
        sc = bn(conv(x, params['ws'], stride, 0), params['bns'])
    else:
        sc = x
    return jnp.maximum(y + sc, 0.0)


# --------------------------------- main -------------------------------------

if __name__ == "__main__":
    key = jax.random.PRNGKey(0)

    configs = [
        # (in_channels, out_channels, stride, input shape)
        (4, 8, 2, (2, 4, 16, 16)),    # projection shortcut (1x1 conv + BN)
        (8, 8, 1, (2, 8, 16, 16)),    # identity shortcut
    ]
    for idx, (cin, cout, stride, shape) in enumerate(configs):
        k_x, k_p = jax.random.split(jax.random.fold_in(key, idx))
        x = jax.random.normal(k_x, shape, jnp.float32)
        params = init_basic_block_params(k_p, cin, cout, stride)

        out = jax.block_until_ready(basic_block_pallas(params, x, stride))
        ref = basic_block_ref(params, x, stride)
        assert out.shape == ref.shape, (out.shape, ref.shape)
        # bf16 MXU operands / bf16-folded weights -> loosened tolerance vs f32 ref.
        max_err = float(jnp.max(jnp.abs(out - ref)))
        assert jnp.allclose(out, ref, atol=1e-1, rtol=1e-1), max_err

    print("KERNEL_OK")
</pallas_src>

<mosaic_0001>
module attributes {stable_mosaic.version = 11 : i64} {
  func.func @kernel(%arg0: i32, %arg1: memref<1x16x122xbf16, #tpu.memory_space<vmem>>, %arg2: memref<72x4xbf16, #tpu.memory_space<vmem>>, %arg3: memref<8x1xf32, #tpu.memory_space<vmem>>, %arg4: memref<72x8xbf16, #tpu.memory_space<vmem>>, %arg5: memref<8x1xf32, #tpu.memory_space<vmem>>, %arg6: memref<1x100xf32, #tpu.memory_space<vmem>>, %arg7: memref<8x4xbf16, #tpu.memory_space<vmem>>, %arg8: memref<8x1xf32, #tpu.memory_space<vmem>>, %arg9: memref<1x8x100xf32, #tpu.memory_space<vmem>>, %arg10: memref<8x122xbf16, #tpu.memory_space<vmem>>) attributes {dimension_semantics = [#tpu.dimension_semantics<parallel>], iteration_bounds = array<i64: 2>, scalar_prefetch = 0 : i64, scratch_operands = 1 : i64, tpu.core_type = #tpu.core_type<tc>, window_params = [{transform_indices = @transform_0, window_bounds = array<i64: 1, 16, 122>}, {pipeline_mode = #tpu.pipeline_mode<synchronous>, transform_indices = @transform_1, window_bounds = array<i64: 72, 4>}, {pipeline_mode = #tpu.pipeline_mode<synchronous>, transform_indices = @transform_2, window_bounds = array<i64: 8, 1>}, {pipeline_mode = #tpu.pipeline_mode<synchronous>, transform_indices = @transform_3, window_bounds = array<i64: 72, 8>}, {pipeline_mode = #tpu.pipeline_mode<synchronous>, transform_indices = @transform_4, window_bounds = array<i64: 8, 1>}, {pipeline_mode = #tpu.pipeline_mode<synchronous>, transform_indices = @transform_5, window_bounds = array<i64: 1, 100>}, {pipeline_mode = #tpu.pipeline_mode<synchronous>, transform_indices = @transform_6, window_bounds = array<i64: 8, 4>}, {pipeline_mode = #tpu.pipeline_mode<synchronous>, transform_indices = @transform_7, window_bounds = array<i64: 8, 1>}, {transform_indices = @transform_8, window_bounds = array<i64: 1, 8, 100>}]} {
    %cst = arith.constant 0.000000e+00 : f32
    %0 = vector.broadcast %cst : f32 to vector<8x100xf32>
    %c0 = arith.constant 0 : index
    %c0_0 = arith.constant 0 : index
    %c11 = arith.constant 11 : index
    %1 = vector.load %arg1[%c0, %c0_0, %c11] : memref<1x16x122xbf16, #tpu.memory_space<vmem>>, vector<1x4x100xbf16>
    %2 = vector.shape_cast %1 : vector<1x4x100xbf16> to vector<4x100xbf16>
    %c0_1 = arith.constant 0 : index
    %c0_2 = arith.constant 0 : index
    %3 = vector.load %arg2[%c0_1, %c0_2] : memref<72x4xbf16, #tpu.memory_space<vmem>>, vector<8x4xbf16>
    %cst_3 = arith.constant dense<0.000000e+00> : vector<8x100xf32>
    %4 = tpu.matmul %3, %2, %cst_3 {dimension_numbers = #tpu.dot_dimension_numbers<[1], [0], [0], [1], [0, 0, 1, 1], [], []>} : vector<8x4xbf16>, vector<4x100xbf16>, vector<8x100xf32> -> vector<8x100xf32>
    %5 = arith.addf %0, %4 : vector<8x100xf32>
    %c0_4 = arith.constant 0 : index
    %c4 = arith.constant 4 : index
    %c11_5 = arith.constant 11 : index
    %6 = vector.load %arg1[%c0_4, %c4, %c11_5] : memref<1x16x122xbf16, #tpu.memory_space<vmem>>, vector<1x4x100xbf16>
    %7 = vector.shape_cast %6 : vector<1x4x100xbf16> to vector<4x100xbf16>
    %c8 = arith.constant 8 : index
    %c0_6 = arith.constant 0 : index
    %8 = vector.load %arg2[%c8, %c0_6] : memref<72x4xbf16, #tpu.memory_space<vmem>>, vector<8x4xbf16>
    %cst_7 = arith.constant dense<0.000000e+00> : vector<8x100xf32>
    %9 = tpu.matmul %8, %7, %cst_7 {dimension_numbers = #tpu.dot_dimension_numbers<[1], [0], [0], [1], [0, 0, 1, 1], [], []>} : vector<8x4xbf16>, vector<4x100xbf16>, vector<8x100xf32> -> vector<8x100xf32>
    %10 = arith.addf %5, %9 : vector<8x100xf32>
    %c0_8 = arith.constant 0 : index
    %c0_9 = arith.constant 0 : index
    %c12 = arith.constant 12 : index
    %11 = vector.load %arg1[%c0_8, %c0_9, %c12] : memref<1x16x122xbf16, #tpu.memory_space<vmem>>, vector<1x4x100xbf16>
    %12 = vector.shape_cast %11 : vector<1x4x100xbf16> to vector<4x100xbf16>
    %c16 = arith.constant 16 : index
    %c0_10 = arith.constant 0 : index
    %13 = vector.load %arg2[%c16, %c0_10] : memref<72x4xbf16, #tpu.memory_space<vmem>>, vector<8x4xbf16>
    %cst_11 = arith.constant dense<0.000000e+00> : vector<8x100xf32>
    %14 = tpu.matmul %13, %12, %cst_11 {dimension_numbers = #tpu.dot_dimension_numbers<[1], [0], [0], [1], [0, 0, 1, 1], [], []>} : vector<8x4xbf16>, vector<4x100xbf16>, vector<8x100xf32> -> vector<8x100xf32>
    %15 = arith.addf %10, %14 : vector<8x100xf32>
    %c0_12 = arith.constant 0 : index
    %c8_13 = arith.constant 8 : index
    %c11_14 = arith.constant 11 : index
    %16 = vector.load %arg1[%c0_12, %c8_13, %c11_14] : memref<1x16x122xbf16, #tpu.memory_space<vmem>>, vector<1x4x100xbf16>
    %17 = vector.shape_cast %16 : vector<1x4x100xbf16> to vector<4x100xbf16>
    %c24 = arith.constant 24 : index
    %c0_15 = arith.constant 0 : index
    %18 = vector.load %arg2[%c24, %c0_15] : memref<72x4xbf16, #tpu.memory_space<vmem>>, vector<8x4xbf16>
    %cst_16 = arith.constant dense<0.000000e+00> : vector<8x100xf32>
    %19 = tpu.matmul %18, %17, %cst_16 {dimension_numbers = #tpu.dot_dimension_numbers<[1], [0], [0], [1], [0, 0, 1, 1], [], []>} : vector<8x4xbf16>, vector<4x100xbf16>, vector<8x100xf32> -> vector<8x100xf32>
    %20 = arith.addf %15, %19 : vector<8x100xf32>
    %c0_17 = arith.constant 0 : index
    %c12_18 = arith.constant 12 : index
    %c11_19 = arith.constant 11 : index
    %21 = vector.load %arg1[%c0_17, %c12_18, %c11_19] : memref<1x16x122xbf16, #tpu.memory_space<vmem>>, vector<1x4x100xbf16>
    %22 = vector.shape_cast %21 : vector<1x4x100xbf16> to vector<4x100xbf16>
    %c32 = arith.constant 32 : index
    %c0_20 = arith.constant 0 : index
    %23 = vector.load %arg2[%c32, %c0_20] : memref<72x4xbf16, #tpu.memory_space<vmem>>, vector<8x4xbf16>
    %cst_21 = arith.constant dense<0.000000e+00> : vector<8x100xf32>
    %24 = tpu.matmul %23, %22, %cst_21 {dimension_numbers = #tpu.dot_dimension_numbers<[1], [0], [0], [1], [0, 0, 1, 1], [], []>} : vector<8x4xbf16>, vector<4x100xbf16>, vector<8x100xf32> -> vector<8x100xf32>
    %25 = arith.addf %20, %24 : vector<8x100xf32>
    %c0_22 = arith.constant 0 : index
    %c8_23 = arith.constant 8 : index
    %c12_24 = arith.constant 12 : index
    %26 = vector.load %arg1[%c0_22, %c8_23, %c12_24] : memref<1x16x122xbf16, #tpu.memory_space<vmem>>, vector<1x4x100xbf16>
    %27 = vector.shape_cast %26 : vector<1x4x100xbf16> to vector<4x100xbf16>
    %c40 = arith.constant 40 : index
    %c0_25 = arith.constant 0 : index
    %28 = vector.load %arg2[%c40, %c0_25] : memref<72x4xbf16, #tpu.memory_space<vmem>>, vector<8x4xbf16>
    %cst_26 = arith.constant dense<0.000000e+00> : vector<8x100xf32>
    %29 = tpu.matmul %28, %27, %cst_26 {dimension_numbers = #tpu.dot_dimension_numbers<[1], [0], [0], [1], [0, 0, 1, 1], [], []>} : vector<8x4xbf16>, vector<4x100xbf16>, vector<8x100xf32> -> vector<8x100xf32>
    %30 = arith.addf %25, %29 : vector<8x100xf32>
    %c0_27 = arith.constant 0 : index
    %c0_28 = arith.constant 0 : index
    %c21 = arith.constant 21 : index
    %31 = vector.load %arg1[%c0_27, %c0_28, %c21] : memref<1x16x122xbf16, #tpu.memory_space<vmem>>, vector<1x4x100xbf16>
    %32 = vector.shape_cast %31 : vector<1x4x100xbf16> to vector<4x100xbf16>
    %c48 = arith.constant 48 : index
    %c0_29 = arith.constant 0 : index
    %33 = vector.load %arg2[%c48, %c0_29] : memref<72x4xbf16, #tpu.memory_space<vmem>>, vector<8x4xbf16>
    %cst_30 = arith.constant dense<0.000000e+00> : vector<8x100xf32>
    %34 = tpu.matmul %33, %32, %cst_30 {dimension_numbers = #tpu.dot_dimension_numbers<[1], [0], [0], [1], [0, 0, 1, 1], [], []>} : vector<8x4xbf16>, vector<4x100xbf16>, vector<8x100xf32> -> vector<8x100xf32>
    %35 = arith.addf %30, %34 : vector<8x100xf32>
    %c0_31 = arith.constant 0 : index
    %c4_32 = arith.constant 4 : index
    %c21_33 = arith.constant 21 : index
    %36 = vector.load %arg1[%c0_31, %c4_32, %c21_33] : memref<1x16x122xbf16, #tpu.memory_space<vmem>>, vector<1x4x100xbf16>
    %37 = vector.shape_cast %36 : vector<1x4x100xbf16> to vector<4x100xbf16>
    %c56 = arith.constant 56 : index
    %c0_34 = arith.constant 0 : index
    %38 = vector.load %arg2[%c56, %c0_34] : memref<72x4xbf16, #tpu.memory_space<vmem>>, vector<8x4xbf16>
    %cst_35 = arith.constant dense<0.000000e+00> : vector<8x100xf32>
    %39 = tpu.matmul %38, %37, %cst_35 {dimension_numbers = #tpu.dot_dimension_numbers<[1], [0], [0], [1], [0, 0, 1, 1], [], []>} : vector<8x4xbf16>, vector<4x100xbf16>, vector<8x100xf32> -> vector<8x100xf32>
    %40 = arith.addf %35, %39 : vector<8x100xf32>
    %c0_36 = arith.constant 0 : index
    %c0_37 = arith.constant 0 : index
    %c22 = arith.constant 22 : index
    %41 = vector.load %arg1[%c0_36, %c0_37, %c22] : memref<1x16x122xbf16, #tpu.memory_space<vmem>>, vector<1x4x100xbf16>
    %42 = vector.shape_cast %41 : vector<1x4x100xbf16> to vector<4x100xbf16>
    %c64 = arith.constant 64 : index
    %c0_38 = arith.constant 0 : index
    %43 = vector.load %arg2[%c64, %c0_38] : memref<72x4xbf16, #tpu.memory_space<vmem>>, vector<8x4xbf16>
    %cst_39 = arith.constant dense<0.000000e+00> : vector<8x100xf32>
    %44 = tpu.matmul %43, %42, %cst_39 {dimension_numbers = #tpu.dot_dimension_numbers<[1], [0], [0], [1], [0, 0, 1, 1], [], []>} : vector<8x4xbf16>, vector<4x100xbf16>, vector<8x100xf32> -> vector<8x100xf32>
    %45 = arith.addf %40, %44 : vector<8x100xf32>
    %c0_40 = arith.constant 0 : index
    %c0_41 = arith.constant 0 : index
    %46 = vector.load %arg3[%c0_40, %c0_41] : memref<8x1xf32, #tpu.memory_space<vmem>>, vector<8x1xf32>
    %47 = vector.broadcast %46 : vector<8x1xf32> to vector<8x100xf32>
    %48 = arith.addf %45, %47 : vector<8x100xf32>
    %cst_42 = arith.constant 0.000000e+00 : f32
    %49 = vector.broadcast %cst_42 : f32 to vector<8x100xf32>
    %50 = arith.maximumf %48, %49 : vector<8x100xf32>
    %c0_43 = arith.constant 0 : index
    %c0_44 = arith.constant 0 : index
    %51 = vector.load %arg6[%c0_43, %c0_44] : memref<1x100xf32, #tpu.memory_space<vmem>>, vector<1x100xf32>
    %52 = vector.broadcast %51 : vector<1x100xf32> to vector<8x100xf32>
    %53 = arith.mulf %50, %52 : vector<8x100xf32>
    %cst_45 = arith.constant 0.000000e+00 : bf16
    %54 = vector.broadcast %cst_45 : bf16 to vector<8x122xbf16>
    %c0_46 = arith.constant 0 : index
    %c0_47 = arith.constant 0 : index
    %55 = vector.load %arg10[%c0_46, %c0_47] : memref<8x122xbf16, #tpu.memory_space<vmem>>, vector<8x122xbf16>
    tpu.vector_store %arg10[%c0_46, %c0_47], %54 {strides = array<i32>} : memref<8x122xbf16, #tpu.memory_space<vmem>>, vector<8x122xbf16>,
    %56 = arith.truncf %53 : vector<8x100xf32> to vector<8x100xbf16>
    %c0_48 = arith.constant 0 : index
    %c11_49 = arith.constant 11 : index
    %57 = vector.load %arg10[%c0_48, %c11_49] : memref<8x122xbf16, #tpu.memory_space<vmem>>, vector<8x100xbf16>
    tpu.vector_store %arg10[%c0_48, %c11_49], %56 {strides = array<i32>} : memref<8x122xbf16, #tpu.memory_space<vmem>>, vector<8x100xbf16>,
    %cst_50 = arith.constant 0.000000e+00 : f32
    %58 = vector.broadcast %cst_50 : f32 to vector<8x100xf32>
    %c0_51 = arith.constant 0 : index
    %c0_52 = arith.constant 0 : index
    %59 = vector.load %arg10[%c0_51, %c0_52] : memref<8x122xbf16, #tpu.memory_space<vmem>>, vector<8x100xbf16>
    %c0_53 = arith.constant 0 : index
    %c0_54 = arith.constant 0 : index
    %60 = vector.load %arg4[%c0_53, %c0_54] : memref<72x8xbf16, #tpu.memory_space<vmem>>, vector<8x8xbf16>
    %cst_55 = arith.constant dense<0.000000e+00> : vector<8x100xf32>
    %61 = tpu.matmul %60, %59, %cst_55 {dimension_numbers = #tpu.dot_dimension_numbers<[1], [0], [0], [1], [0, 0, 1, 1], [], []>} : vector<8x8xbf16>, vector<8x100xbf16>, vector<8x100xf32> -> vector<8x100xf32>
    %62 = arith.addf %58, %61 : vector<8x100xf32>
    %c0_56 = arith.constant 0 : index
    %c1 = arith.constant 1 : index
    %63 = vector.load %arg10[%c0_56, %c1] : memref<8x122xbf16, #tpu.memory_space<vmem>>, vector<8x100xbf16>
    %c8_57 = arith.constant 8 : index
    %c0_58 = arith.constant 0 : index
    %64 = vector.load %arg4[%c8_57, %c0_58] : memref<72x8xbf16, #tpu.memory_space<vmem>>, vector<8x8xbf16>
    %cst_59 = arith.constant dense<0.000000e+00> : vector<8x100xf32>
    %65 = tpu.matmul %64, %63, %cst_59 {dimension_numbers = #tpu.dot_dimension_numbers<[1], [0], [0], [1], [0, 0, 1, 1], [], []>} : vector<8x8xbf16>, vector<8x100xbf16>, vector<8x100xf32> -> vector<8x100xf32>
    %66 = arith.addf %62, %65 : vector<8x100xf32>
    %c0_60 = arith.constant 0 : index
    %c2 = arith.constant 2 : index
    %67 = vector.load %arg10[%c0_60, %c2] : memref<8x122xbf16, #tpu.memory_space<vmem>>, vector<8x100xbf16>
    %c16_61 = arith.constant 16 : index
    %c0_62 = arith.constant 0 : index
    %68 = vector.load %arg4[%c16_61, %c0_62] : memref<72x8xbf16, #tpu.memory_space<vmem>>, vector<8x8xbf16>
    %cst_63 = arith.constant dense<0.000000e+00> : vector<8x100xf32>
    %69 = tpu.matmul %68, %67, %cst_63 {dimension_numbers = #tpu.dot_dimension_numbers<[1], [0], [0], [1], [0, 0, 1, 1], [], []>} : vector<8x8xbf16>, vector<8x100xbf16>, vector<8x100xf32> -> vector<8x100xf32>
    %70 = arith.addf %66, %69 : vector<8x100xf32>
    %c0_64 = arith.constant 0 : index
    %c10 = arith.constant 10 : index
    %71 = vector.load %arg10[%c0_64, %c10] : memref<8x122xbf16, #tpu.memory_space<vmem>>, vector<8x100xbf16>
    %c24_65 = arith.constant 24 : index
    %c0_66 = arith.constant 0 : index
    %72 = vector.load %arg4[%c24_65, %c0_66] : memref<72x8xbf16, #tpu.memory_space<vmem>>, vector<8x8xbf16>
    %cst_67 = arith.constant dense<0.000000e+00> : vector<8x100xf32>
    %73 = tpu.matmul %72, %71, %cst_67 {dimension_numbers = #tpu.dot_dimension_numbers<[1], [0], [0], [1], [0, 0, 1, 1], [], []>} : vector<8x8xbf16>, vector<8x100xbf16>, vector<8x100xf32> -> vector<8x100xf32>
    %74 = arith.addf %70, %73 : vector<8x100xf32>
    %c0_68 = arith.constant 0 : index
    %c11_69 = arith.constant 11 : index
    %75 = vector.load %arg10[%c0_68, %c11_69] : memref<8x122xbf16, #tpu.memory_space<vmem>>, vector<8x100xbf16>
    %c32_70 = arith.constant 32 : index
    %c0_71 = arith.constant 0 : index
    %76 = vector.load %arg4[%c32_70, %c0_71] : memref<72x8xbf16, #tpu.memory_space<vmem>>, vector<8x8xbf16>
    %cst_72 = arith.constant dense<0.000000e+00> : vector<8x100xf32>
    %77 = tpu.matmul %76, %75, %cst_72 {dimension_numbers = #tpu.dot_dimension_numbers<[1], [0], [0], [1], [0, 0, 1, 1], [], []>} : vector<8x8xbf16>, vector<8x100xbf16>, vector<8x100xf32> -> vector<8x100xf32>
    %78 = arith.addf %74, %77 : vector<8x100xf32>
    %c0_73 = arith.constant 0 : index
    %c12_74 = arith.constant 12 : index
    %79 = vector.load %arg10[%c0_73, %c12_74] : memref<8x122xbf16, #tpu.memory_space<vmem>>, vector<8x100xbf16>
    %c40_75 = arith.constant 40 : index
    %c0_76 = arith.constant 0 : index
    %80 = vector.load %arg4[%c40_75, %c0_76] : memref<72x8xbf16, #tpu.memory_space<vmem>>, vector<8x8xbf16>
    %cst_77 = arith.constant dense<0.000000e+00> : vector<8x100xf32>
    %81 = tpu.matmul %80, %79, %cst_77 {dimension_numbers = #tpu.dot_dimension_numbers<[1], [0], [0], [1], [0, 0, 1, 1], [], []>} : vector<8x8xbf16>, vector<8x100xbf16>, vector<8x100xf32> -> vector<8x100xf32>
    %82 = arith.addf %78, %81 : vector<8x100xf32>
    %c0_78 = arith.constant 0 : index
    %c20 = arith.constant 20 : index
    %83 = vector.load %arg10[%c0_78, %c20] : memref<8x122xbf16, #tpu.memory_space<vmem>>, vector<8x100xbf16>
    %c48_79 = arith.constant 48 : index
    %c0_80 = arith.constant 0 : index
    %84 = vector.load %arg4[%c48_79, %c0_80] : memref<72x8xbf16, #tpu.memory_space<vmem>>, vector<8x8xbf16>
    %cst_81 = arith.constant dense<0.000000e+00> : vector<8x100xf32>
    %85 = tpu.matmul %84, %83, %cst_81 {dimension_numbers = #tpu.dot_dimension_numbers<[1], [0], [0], [1], [0, 0, 1, 1], [], []>} : vector<8x8xbf16>, vector<8x100xbf16>, vector<8x100xf32> -> vector<8x100xf32>
    %86 = arith.addf %82, %85 : vector<8x100xf32>
    %c0_82 = arith.constant 0 : index
    %c21_83 = arith.constant 21 : index
    %87 = vector.load %arg10[%c0_82, %c21_83] : memref<8x122xbf16, #tpu.memory_space<vmem>>, vector<8x100xbf16>
    %c56_84 = arith.constant 56 : index
    %c0_85 = arith.constant 0 : index
    %88 = vector.load %arg4[%c56_84, %c0_85] : memref<72x8xbf16, #tpu.memory_space<vmem>>, vector<8x8xbf16>
    %cst_86 = arith.constant dense<0.000000e+00> : vector<8x100xf32>
    %89 = tpu.matmul %88, %87, %cst_86 {dimension_numbers = #tpu.dot_dimension_numbers<[1], [0], [0], [1], [0, 0, 1, 1], [], []>} : vector<8x8xbf16>, vector<8x100xbf16>, vector<8x100xf32> -> vector<8x100xf32>
    %90 = arith.addf %86, %89 : vector<8x100xf32>
    %c0_87 = arith.constant 0 : index
    %c22_88 = arith.constant 22 : index
    %91 = vector.load %arg10[%c0_87, %c22_88] : memref<8x122xbf16, #tpu.memory_space<vmem>>, vector<8x100xbf16>
    %c64_89 = arith.constant 64 : index
    %c0_90 = arith.constant 0 : index
    %92 = vector.load %arg4[%c64_89, %c0_90] : memref<72x8xbf16, #tpu.memory_space<vmem>>, vector<8x8xbf16>
    %cst_91 = arith.constant dense<0.000000e+00> : vector<8x100xf32>
    %93 = tpu.matmul %92, %91, %cst_91 {dimension_numbers = #tpu.dot_dimension_numbers<[1], [0], [0], [1], [0, 0, 1, 1], [], []>} : vector<8x8xbf16>, vector<8x100xbf16>, vector<8x100xf32> -> vector<8x100xf32>
    %94 = arith.addf %90, %93 : vector<8x100xf32>
    %c0_92 = arith.constant 0 : index
    %c0_93 = arith.constant 0 : index
    %95 = vector.load %arg5[%c0_92, %c0_93] : memref<8x1xf32, #tpu.memory_space<vmem>>, vector<8x1xf32>
    %96 = vector.broadcast %95 : vector<8x1xf32> to vector<8x100xf32>
    %97 = arith.addf %94, %96 : vector<8x100xf32>
    %c0_94 = arith.constant 0 : index
    %c12_95 = arith.constant 12 : index
    %c11_96 = arith.constant 11 : index
    %98 = vector.load %arg1[%c0_94, %c12_95, %c11_96] : memref<1x16x122xbf16, #tpu.memory_space<vmem>>, vector<1x4x100xbf16>
    %99 = vector.shape_cast %98 : vector<1x4x100xbf16> to vector<4x100xbf16>
    %c0_97 = arith.constant 0 : index
    %c0_98 = arith.constant 0 : index
    %100 = vector.load %arg7[%c0_97, %c0_98] : memref<8x4xbf16, #tpu.memory_space<vmem>>, vector<8x4xbf16>
    %cst_99 = arith.constant dense<0.000000e+00> : vector<8x100xf32>
    %101 = tpu.matmul %100, %99, %cst_99 {dimension_numbers = #tpu.dot_dimension_numbers<[1], [0], [0], [1], [0, 0, 1, 1], [], []>} : vector<8x4xbf16>, vector<4x100xbf16>, vector<8x100xf32> -> vector<8x100xf32>
    %102 = arith.addf %97, %101 : vector<8x100xf32>
    %c0_100 = arith.constant 0 : index
    %c0_101 = arith.constant 0 : index
    %103 = vector.load %arg8[%c0_100, %c0_101] : memref<8x1xf32, #tpu.memory_space<vmem>>, vector<8x1xf32>
    %104 = vector.broadcast %103 : vector<8x1xf32> to vector<8x100xf32>
    %105 = arith.addf %102, %104 : vector<8x100xf32>
    %cst_102 = arith.constant 0.000000e+00 : f32
    %106 = vector.broadcast %cst_102 : f32 to vector<8x100xf32>
    %107 = arith.maximumf %105, %106 : vector<8x100xf32>
    %c0_103 = arith.constant 0 : index
    %c0_104 = arith.constant 0 : index
    %c0_105 = arith.constant 0 : index
    %108 = vector.load %arg9[%c0_103, %c0_104, %c0_105] : memref<1x8x100xf32, #tpu.memory_space<vmem>>, vector<1x8x100xf32>
    %109 = vector.shape_cast %108 : vector<1x8x100xf32> to vector<8x100xf32>
    %110 = vector.shape_cast %107 : vector<8x100xf32> to vector<1x8x100xf32>
    tpu.vector_store %arg9[%c0_103, %c0_104, %c0_105], %110 {strides = array<i32>} : memref<1x8x100xf32, #tpu.memory_space<vmem>>, vector<1x8x100xf32>,
    return
  }
  func.func @transform_0(%arg0: i32) -> (i32, i32, i32) {
    %c0_i32 = arith.constant 0 : i32
    %c0_i32_0 = arith.constant 0 : i32
    %c0_i32_1 = arith.constant 0 : i32
    return %arg0, %c0_i32, %c0_i32_0 : i32, i32, i32
  }
  func.func @transform_1(%arg0: i32) -> (i32, i32) {
    %c0_i32 = arith.constant 0 : i32
    %c0_i32_0 = arith.constant 0 : i32
    %c0_i32_1 = arith.constant 0 : i32
    return %c0_i32, %c0_i32_0 : i32, i32
  }
  func.func @transform_2(%arg0: i32) -> (i32, i32) {
    %c0_i32 = arith.constant 0 : i32
    %c0_i32_0 = arith.constant 0 : i32
    %c0_i32_1 = arith.constant 0 : i32
    return %c0_i32, %c0_i32_0 : i32, i32
  }
  func.func @transform_3(%arg0: i32) -> (i32, i32) {
    %c0_i32 = arith.constant 0 : i32
    %c0_i32_0 = arith.constant 0 : i32
    %c0_i32_1 = arith.constant 0 : i32
    return %c0_i32, %c0_i32_0 : i32, i32
  }
  func.func @transform_4(%arg0: i32) -> (i32, i32) {
    %c0_i32 = arith.constant 0 : i32
    %c0_i32_0 = arith.constant 0 : i32
    %c0_i32_1 = arith.constant 0 : i32
    return %c0_i32, %c0_i32_0 : i32, i32
  }
  func.func @transform_5(%arg0: i32) -> (i32, i32) {
    %c0_i32 = arith.constant 0 : i32
    %c0_i32_0 = arith.constant 0 : i32
    %c0_i32_1 = arith.constant 0 : i32
    return %c0_i32, %c0_i32_0 : i32, i32
  }
  func.func @transform_6(%arg0: i32) -> (i32, i32) {
    %c0_i32 = arith.constant 0 : i32
    %c0_i32_0 = arith.constant 0 : i32
    %c0_i32_1 = arith.constant 0 : i32
    return %c0_i32, %c0_i32_0 : i32, i32
  }
  func.func @transform_7(%arg0: i32) -> (i32, i32) {
    %c0_i32 = arith.constant 0 : i32
    %c0_i32_0 = arith.constant 0 : i32
    %c0_i32_1 = arith.constant 0 : i32
    return %c0_i32, %c0_i32_0 : i32, i32
  }
  func.func @transform_8(%arg0: i32) -> (i32, i32, i32) {
    %c0_i32 = arith.constant 0 : i32
    %c0_i32_0 = arith.constant 0 : i32
    %c0_i32_1 = arith.constant 0 : i32
    return %arg0, %c0_i32, %c0_i32_0 : i32, i32, i32
  }
}

</mosaic_0001>

<llo_original>
// kernel: tpu_custom_call.1
$region0: #{tpu_custom_call.1}
  #allocation0 [shape = 'u32[]', space=smem, size = 0x4, offset = 0x4, fixed_abs, tag = 'smem constant byte address 0x4 - core index']
  #allocation1 [shape = 'u32[72,128]{1,0:T(1,128)}', space=vmem, size = 0x9000, scoped, tag = 'internal scratch']
  #allocation2 [shape = 'bf16[8,122]{1,0:T(8,128)(2,1)}', space=vmem, size = 0x800, scoped, tag = 'scratch operand']
  %s0 = inlined_call_operand.vmem [shape: bf16[2,16,122], index: 0, kind: input, shape index: {}]
  %s1 = inlined_call_operand.vmem [shape: bf16[72,4], index: 1, kind: input, shape index: {}]
  %s2 = inlined_call_operand.vmem [shape: f32[8,1], index: 2, kind: input, shape index: {}]
  %s3 = inlined_call_operand.vmem [shape: bf16[72,8], index: 3, kind: input, shape index: {}]
  %s4 = inlined_call_operand.vmem [shape: f32[8,1], index: 4, kind: input, shape index: {}]
  %s5 = inlined_call_operand.vmem [shape: f32[1,100], index: 5, kind: input, shape index: {}]
  %s6 = inlined_call_operand.vmem [shape: bf16[8,4], index: 6, kind: input, shape index: {}]
  %s7 = inlined_call_operand.vmem [shape: f32[8,1], index: 7, kind: input, shape index: {}]
  %s8 = inlined_call_operand.hbm [shape: f32[2,8,100], index: 8, kind: output, shape index: {}]
  %s9 = sld [smem:[#allocation0]]
  $region65: #{tpu_custom_call.1} parent=0
    _
  %s11 = ssub.s32 1, %s9
  %s12 = scalar_select 0, %s11, %s9
  $region1: #{tpu_custom_call.1} parent=0
    #allocation3 [shape = 'u8[8192]{0}', space=vmem, size = 0x2000, scoped, tag = 'output window, operand 0']
    #allocation4 [shape = 's32[2]{0}', space=sflag, size = 0x8, scoped, tag = 'scoped memory for tpu_custom_call.1']
    %13 = vsyncpa [#allocation4], 0
    %s14 = scalar_lea.sflag [#allocation4], 1
    %15 = vsyncpa %s14, 0
    loop: start=0, step=1, limit=4
    $region2: #{tpu_custom_call.1} parent=1 // loop_pre_header
      _
    $region3: #{tpu_custom_call.1} parent=1 // loop_header
      %s17 = sphi 0, %s21
      %p18 = scmp.ge.s32.totalorder %s17, 4
      %s27 = sphi 0, %s29
      %s30 = sphi 0, %s27
      %s31 = sphi 0, %s30
      %s47 = sphi 0, %s31
      %s51 = sphi 0, %s51
      %s53 = sphi 0, %s51
      %s54 = sphi 0, %s53
      %s68 = sphi 0, %s54
      %s72 = sphi 0, %s72
      %s74 = sphi 0, %s72
      %s75 = sphi 0, %s74
      %s89 = sphi 0, %s75
      %s93 = sphi 0, %s93
      %s95 = sphi 0, %s93
      %s96 = sphi 0, %s95
      %s110 = sphi 0, %s96
      %s114 = sphi 0, %s114
      %s116 = sphi 0, %s114
      %s117 = sphi 0, %s116
      %s131 = sphi 0, %s117
      %s135 = sphi 0, %s135
      %s137 = sphi 0, %s135
      %s138 = sphi 0, %s137
      %s152 = sphi 0, %s138
      %s156 = sphi 0, %s156
      %s158 = sphi 0, %s156
      %s159 = sphi 0, %s158
      %s173 = sphi 0, %s159
      %s177 = sphi 0, %s177
      %s179 = sphi 0, %s177
      %s180 = sphi 0, %s179
      %s194 = sphi 0, %s180
      %s200 = sphi 0, %s202
      %s203 = sphi 0, %s200
      %s204 = sphi 0, %s203
      %s220 = sphi 0, %s204
    $region4: #{tpu_custom_call.1} parent=1 // loop_header_branch
      %20 = sbr.rel (%p18) target = $region8
    $region5: #{tpu_custom_call.1} parent=1 // loop_body
      %s22 = ssub.s32 %s17, 1
      %s23 = ssub.s32 %s17, 2
      %s24 = sadd.s32 %s17, 1
      %s25 = ssub.s32 %s17, %s24
      %p26 = scmp.eq.s32.totalorder %s25, 0
      %s28 = sadd.s32 %s27, 1
      %s29 = scalar_select %p26, %s27, %s28
      %p32 = pneg %p26
      %p33 = scmp.eq.s32.totalorder %s17, 1
      %p34 = por %p32, %p33
      %p35 = scmp.ne.s32.totalorder %s27, %s30
      %p36 = scmp.eq.s32.totalorder %s17, 0
      %p37 = por %p35, %p36
      %p38 = scmp.ne.s32.totalorder %s27, %s30
      %p39 = scmp.eq.s32.totalorder %s22, 1
      %p40 = por %p38, %p39
      %p41 = scmp.ne.s32.totalorder %s30, %s31
      %p42 = scmp.eq.s32.totalorder %s22, 0
      %p43 = por %p41, %p42
      %p44 = scmp.ne.s32.totalorder %s30, %s31
      %p45 = scmp.eq.s32.totalorder %s23, 1
      %p46 = por %p44, %p45
      %p48 = scmp.ne.s32.totalorder %s31, %s47
      %p49 = scmp.eq.s32.totalorder %s23, 0
      %p50 = por %p48, %p49
      %s52 = sadd.s32 %s51, 1
      %p55 = scmp.eq.s32.totalorder %s17, 1
      %p56 = scmp.ne.s32.totalorder %s51, %s53
      %p57 = scmp.eq.s32.totalorder %s17, 0
      %p58 = por %p56, %p57
      %p59 = scmp.ne.s32.totalorder %s51, %s53
      %p60 = scmp.eq.s32.totalorder %s22, 1
      %p61 = por %p59, %p60
      %p62 = scmp.ne.s32.totalorder %s53, %s54
      %p63 = scmp.eq.s32.totalorder %s22, 0
      %p64 = por %p62, %p63
      %p65 = scmp.ne.s32.totalorder %s53, %s54
      %p66 = scmp.eq.s32.totalorder %s23, 1
      %p67 = por %p65, %p66
      %p69 = scmp.ne.s32.totalorder %s54, %s68
      %p70 = scmp.eq.s32.totalorder %s23, 0
      %p71 = por %p69, %p70
      %s73 = sadd.s32 %s72, 1
      %p76 = scmp.eq.s32.totalorder %s17, 1
      %p77 = scmp.ne.s32.totalorder %s72, %s74
      %p78 = scmp.eq.s32.totalorder %s17, 0
      %p79 = por %p77, %p78
      %p80 = scmp.ne.s32.totalorder %s72, %s74
      %p81 = scmp.eq.s32.totalorder %s22, 1
      %p82 = por %p80, %p81
      %p83 = scmp.ne.s32.totalorder %s74, %s75
      %p84 = scmp.eq.s32.totalorder %s22, 0
      %p85 = por %p83, %p84
      %p86 = scmp.ne.s32.totalorder %s74, %s75
      %p87 = scmp.eq.s32.totalorder %s23, 1
      %p88 = por %p86, %p87
      %p90 = scmp.ne.s32.totalorder %s75, %s89
      %p91 = scmp.eq.s32.totalorder %s23, 0
      %p92 = por %p90, %p91
      %s94 = sadd.s32 %s93, 1
      %p97 = scmp.eq.s32.totalorder %s17, 1
      %p98 = scmp.ne.s32.totalorder %s93, %s95
      %p99 = scmp.eq.s32.totalorder %s17, 0
      %p100 = por %p98, %p99
      %p101 = scmp.ne.s32.totalorder %s93, %s95
      %p102 = scmp.eq.s32.totalorder %s22, 1
      %p103 = por %p101, %p102
      %p104 = scmp.ne.s32.totalorder %s95, %s96
      %p105 = scmp.eq.s32.totalorder %s22, 0
      %p106 = por %p104, %p105
      %p107 = scmp.ne.s32.totalorder %s95, %s96
      %p108 = scmp.eq.s32.totalorder %s23, 1
      %p109 = por %p107, %p108
      %p111 = scmp.ne.s32.totalorder %s96, %s110
      %p112 = scmp.eq.s32.totalorder %s23, 0
      %p113 = por %p111, %p112
      %s115 = sadd.s32 %s114, 1
      %p118 = scmp.eq.s32.totalorder %s17, 1
      %p119 = scmp.ne.s32.totalorder %s114, %s116
      %p120 = scmp.eq.s32.totalorder %s17, 0
      %p121 = por %p119, %p120
      %p122 = scmp.ne.s32.totalorder %s114, %s116
      %p123 = scmp.eq.s32.totalorder %s22, 1
      %p124 = por %p122, %p123
      %p125 = scmp.ne.s32.totalorder %s116, %s117
      %p126 = scmp.eq.s32.totalorder %s22, 0
      %p127 = por %p125, %p126
      %p128 = scmp.ne.s32.totalorder %s116, %s117
      %p129 = scmp.eq.s32.totalorder %s23, 1
      %p130 = por %p128, %p129
      %p132 = scmp.ne.s32.totalorder %s117, %s131
      %p133 = scmp.eq.s32.totalorder %s23, 0
      %p134 = por %p132, %p133
      %s136 = sadd.s32 %s135, 1
      %p139 = scmp.eq.s32.totalorder %s17, 1
      %p140 = scmp.ne.s32.totalorder %s135, %s137
      %p141 = scmp.eq.s32.totalorder %s17, 0
      %p142 = por %p140, %p141
      %p143 = scmp.ne.s32.totalorder %s135, %s137
      %p144 = scmp.eq.s32.totalorder %s22, 1
      %p145 = por %p143, %p144
      %p146 = scmp.ne.s32.totalorder %s137, %s138
      %p147 = scmp.eq.s32.totalorder %s22, 0
      %p148 = por %p146, %p147
      %p149 = scmp.ne.s32.totalorder %s137, %s138
      %p150 = scmp.eq.s32.totalorder %s23, 1
      %p151 = por %p149, %p150
      %p153 = scmp.ne.s32.totalorder %s138, %s152
      %p154 = scmp.eq.s32.totalorder %s23, 0
      %p155 = por %p153, %p154
      %s157 = sadd.s32 %s156, 1
      %p160 = scmp.eq.s32.totalorder %s17, 1
      %p161 = scmp.ne.s32.totalorder %s156, %s158
      %p162 = scmp.eq.s32.totalorder %s17, 0
      %p163 = por %p161, %p162
      %p164 = scmp.ne.s32.totalorder %s156, %s158
      %p165 = scmp.eq.s32.totalorder %s22, 1
      %p166 = por %p164, %p165
      %p167 = scmp.ne.s32.totalorder %s158, %s159
      %p168 = scmp.eq.s32.totalorder %s22, 0
      %p169 = por %p167, %p168
      %p170 = scmp.ne.s32.totalorder %s158, %s159
      %p171 = scmp.eq.s32.totalorder %s23, 1
      %p172 = por %p170, %p171
      %p174 = scmp.ne.s32.totalorder %s159, %s173
      %p175 = scmp.eq.s32.totalorder %s23, 0
      %p176 = por %p174, %p175
      %s178 = sadd.s32 %s177, 1
      %p181 = scmp.eq.s32.totalorder %s17, 1
      %p182 = scmp.ne.s32.totalorder %s177, %s179
      %p183 = scmp.eq.s32.totalorder %s17, 0
      %p184 = por %p182, %p183
      %p185 = scmp.ne.s32.totalorder %s177, %s179
      %p186 = scmp.eq.s32.totalorder %s22, 1
      %p187 = por %p185, %p186
      %p188 = scmp.ne.s32.totalorder %s179, %s180
      %p189 = scmp.eq.s32.totalorder %s22, 0
      %p190 = por %p188, %p189
      %p191 = scmp.ne.s32.totalorder %s179, %s180
      %p192 = scmp.eq.s32.totalorder %s23, 1
      %p193 = por %p191, %p192
      %p195 = scmp.ne.s32.totalorder %s180, %s194
      %p196 = scmp.eq.s32.totalorder %s23, 0
      %p197 = por %p195, %p196
      %s198 = ssub.s32 %s17, %s24
      %p199 = scmp.eq.s32.totalorder %s198, 0
      %s201 = sadd.s32 %s200, 1
      %s202 = scalar_select %p199, %s200, %s201
      %p205 = pneg %p199
      %p206 = scmp.eq.s32.totalorder %s17, 1
      %p207 = por %p205, %p206
      %p208 = scmp.ne.s32.totalorder %s200, %s203
      %p209 = scmp.eq.s32.totalorder %s17, 0
      %p210 = por %p208, %p209
      %p211 = scmp.ne.s32.totalorder %s200, %s203
      %p212 = scmp.eq.s32.totalorder %s22, 1
      %p213 = por %p211, %p212
      %p214 = scmp.ne.s32.totalorder %s203, %s204
      %p215 = scmp.eq.s32.totalorder %s22, 0
      %p216 = por %p214, %p215
      %p217 = scmp.ne.s32.totalorder %s203, %s204
      %p218 = scmp.eq.s32.totalorder %s23, 1
      %p219 = por %p217, %p218
      %p221 = scmp.ne.s32.totalorder %s204, %s220
      %p222 = scmp.eq.s32.totalorder %s23, 0
      %p223 = por %p221, %p222
      %p224 = scmp.le.s32.totalorder 1, %s17
      %p225 = scmp.lt.s32.totalorder %s17, 3
      %p226 = pnand %p224, %p225
      %p227 = pneg %p226
      // Predicated region
      $region9: #{tpu_custom_call.1} parent=5 // pred_check
        _
      $region10: #{tpu_custom_call.1} parent=5 // pred_check_branch
        %229 = sbr.rel (%p226) target = $region12
      $region11: #{tpu_custom_call.1} parent=5 // pred_region
        %s230 = ssub.s32 %s17, 1
        // Predicated region
        $region13: #{tpu_custom_call.1} parent=11 // pred_check
          %p231 = pneg %p64
        $region14: #{tpu_custom_call.1} parent=11 // pred_check_branch
          %233 = sbr.rel (%p231) target = $region16
        $region15: #{tpu_custom_call.1} parent=11 // pred_region
          _
        $region16: #{tpu_custom_call.1} parent=11 // pred_fallthru
          _
        // Predicated region
        $region17: #{tpu_custom_call.1} parent=11 // pred_check
          %p234 = pneg %p85
        $region18: #{tpu_custom_call.1} parent=11 // pred_check_branch
          %236 = sbr.rel (%p234) target = $region20
        $region19: #{tpu_custom_call.1} parent=11 // pred_region
          _
        $region20: #{tpu_custom_call.1} parent=11 // pred_fallthru
          _
        // Predicated region
        $region21: #{tpu_custom_call.1} parent=11 // pred_check
          %p237 = pneg %p106
        $region22: #{tpu_custom_call.1} parent=11 // pred_check_branch
          %239 = sbr.rel (%p237) target = $region24
        $region23: #{tpu_custom_call.1} parent=11 // pred_region
          _
        $region24: #{tpu_custom_call.1} parent=11 // pred_fallthru
          _
        // Predicated region
        $region25: #{tpu_custom_call.1} parent=11 // pred_check
          %p240 = pneg %p127
        $region26: #{tpu_custom_call.1} parent=11 // pred_check_branch
          %242 = sbr.rel (%p240) target = $region28
        $region27: #{tpu_custom_call.1} parent=11 // pred_region
          _
        $region28: #{tpu_custom_call.1} parent=11 // pred_fallthru
          _
        // Predicated region
        $region29: #{tpu_custom_call.1} parent=11 // pred_check
          %p243 = pneg %p148
        $region30: #{tpu_custom_call.1} parent=11 // pred_check_branch
          %245 = sbr.rel (%p243) target = $region32
        $region31: #{tpu_custom_call.1} parent=11 // pred_region
          _
        $region32: #{tpu_custom_call.1} parent=11 // pred_fallthru
          _
        // Predicated region
        $region33: #{tpu_custom_call.1} parent=11 // pred_check
          %p246 = pneg %p169
        $region34: #{tpu_custom_call.1} parent=11 // pred_check_branch
          %248 = sbr.rel (%p246) target = $region36
        $region35: #{tpu_custom_call.1} parent=11 // pred_region
          _
        $region36: #{tpu_custom_call.1} parent=11 // pred_fallthru
          _
        // Predicated region
        $region37: #{tpu_custom_call.1} parent=11 // pred_check
          %p249 = pneg %p190
        $region38: #{tpu_custom_call.1} parent=11 // pred_check_branch
          %251 = sbr.rel (%p249) target = $region40
        $region39: #{tpu_custom_call.1} parent=11 // pred_region
          _
        $region40: #{tpu_custom_call.1} parent=11 // pred_fallthru
          _
      $region12: #{tpu_custom_call.1} parent=5 // pred_fallthru
        _
      %p252 = scmp.lt.s32.totalorder %s17, 2
      // Predicated region
      $region41: #{tpu_custom_call.1} parent=5 // pred_check
        %p253 = pneg %p252
      $region42: #{tpu_custom_call.1} parent=5 // pred_check_branch
        %255 = sbr.rel (%p253) target = $region44
      $region43: #{tpu_custom_call.1} parent=5 // pred_region
        // Predicated region
        $region45: #{tpu_custom_call.1} parent=43 // pred_check
          %p256 = pneg %p37
        $region46: #{tpu_custom_call.1} parent=43 // pred_check_branch
          %258 = sbr.rel (%p256) target = $region48
        $region47: #{tpu_custom_call.1} parent=43 // pred_region
          %p259 = scmp.lt.s32.totalorder %s17, 1
          %s260 = scalar_select %p259, %s17, 1
          %s261 = smul.addr %s260, 2
          %s262 = smul.addr %s261, 4
          %s263 = scalar_lea.vmem %s0, %s262
        $region48: #{tpu_custom_call.1} parent=43 // pred_fallthru
          _
      $region44: #{tpu_custom_call.1} parent=5 // pred_fallthru
        _
      %p264 = scmp.le.s32.totalorder 1, %s17
      %p265 = scmp.lt.s32.totalorder %s17, 3
      %p266 = pnand %p264, %p265
      %p267 = pneg %p266
      // Predicated region
      $region49: #{tpu_custom_call.1} parent=5 // pred_check
        _
      $region50: #{tpu_custom_call.1} parent=5 // pred_check_branch
        %269 = sbr.rel (%p266) target = $region52
      $region51: #{tpu_custom_call.1} parent=5 // pred_region
        %s270 = ssub.s32 %s17, 1
        %p271 = scmp.lt.s32.totalorder %s22, 1
        %s272 = scalar_select %p271, %s22, 1
        %s273 = smul.addr %s272, 2
        %s274 = smul.addr %s273, 4
        %s275 = scalar_lea.vmem %s0, %s274
        %p276 = pneg %p43
        %p277 = pneg %p40
        %p278 = pneg %p64
        %p279 = pneg %p61
        %p280 = pneg %p85
        %p281 = pneg %p82
        %p282 = pneg %p106
        %p283 = pneg %p103
        %p284 = pneg %p127
        %p285 = pneg %p124
        %p286 = pneg %p148
        %p287 = pneg %p145
        %p288 = pneg %p169
        %p289 = pneg %p166
        %p290 = pneg %p190
        %p291 = pneg %p187
        %p292 = pneg %p216
        %p293 = pneg %p213
        %s294 = sand.u32 %s203, 1
        %s295 = scalar_lea.sflag [#allocation4], %s294
        %s296 = sand.u32 %s203, 1
        %s297 = smul.addr %s296, 8
        %s298 = scalar_lea.vmem [#allocation3], %s297
        %p299 = scmp.lt.s32.totalorder %s22, 1
        %s300 = scalar_select %p299, %s22, 1
        %s301 = smul.addr %s300, 2
        %s302 = smul.addr %s301, 4
        %s303 = scalar_lea.vmem %s0, %s302
        %v305 = vld [vmem:[%s303] sm:$0x3]
        %v306 = vld [vmem:[%s1] sm:$0xf]
        %v307 = vld [vmem:[%s303] sm:$0xc]
        %v308 = vld [vmem:[%s1 + $0x4] sm:$0xf]
        %v310 = vunpack.c.l.b16 %v307
        %v311 = vpack.c.b16 %v310, %v310
        %v312 = vrot.slane %v311, 2
        %313 = vrot.lane.b32.xlu0 %v312, 117
        %v314 = vpop.permute.xlu0 %313
        %vm315 = vcmask 31744
        %v317 = vsel %vm315, %v308, 0
        %vm319 = vcmask 1041408
        %v321 = vsel %vm319, %v314, 0
        %323 = vmatpush.bf16.msra.mxu0 0
        %324 = vmatpush.bf16.msra.mxu0 0
        %325 = vmatpush.bf16.msra.mxu0 0
        %326 = vmatpush.bf16.msra.mxu0 0
        %327 = vmatpush.bf16.msra.mxu0 0
        %328 = vmatpush.bf16.msra.mxu0 0
        %329 = vmatpush.bf16.msra.mxu0 0
        %330 = vmatpush.bf16.msra.mxu0 %v321
        %331 = vmatmul.bf16.gmra.mxu0 %v317
        %v332 = vpop.f32.mrf.mxu0
        %v333 = vadd.f32 0.0, %v332
        %v334 = vpop.f32.mrf.mxu0
        %335 = vdwg.mxu0
        %v337 = vunpack.c.l.b16 %v305
        %v338 = vpack.c.b16 %v337, %v337
        %339 = vrot.lane.b32.xlu0 %v338, 117
        %v340 = vpop.permute.xlu0 %339
        %v342 = vsel %vm315, %v306, 0
        %v345 = vsel %vm319, %v340, 0
        %347 = vmatpush.bf16.msra.mxu0 0
        %348 = vmatpush.bf16.msra.mxu0 0
        %349 = vmatpush.bf16.msra.mxu0 0
        %350 = vmatpush.bf16.msra.mxu0 0
        %351 = vmatpush.bf16.msra.mxu0 0
        %352 = vmatpush.bf16.msra.mxu0 0
        %353 = vmatpush.bf16.msra.mxu0 0
        %354 = vmatpush.bf16.msra.mxu0 %v345
        %355 = vmatmul.bf16.gmra.mxu0 %v342
        %v356 = vpop.f32.mrf.mxu0
        %v357 = vadd.f32 %v333, %v356
        %v358 = vpop.f32.mrf.mxu0
        %359 = vdwg.mxu0
        %v360 = vld [vmem:[%s1 + $0x8] sm:$0xf]
        %361 = vrot.lane.b32.xlu0 %v338, 116
        %v362 = vpop.permute.xlu0 %361
        %v364 = vsel %vm315, %v360, 0
        %v367 = vsel %vm319, %v362, 0
        %369 = vmatpush.bf16.msra.mxu0 0
        %370 = vmatpush.bf16.msra.mxu0 0
        %371 = vmatpush.bf16.msra.mxu0 0
        %372 = vmatpush.bf16.msra.mxu0 0
        %373 = vmatpush.bf16.msra.mxu0 0
        %374 = vmatpush.bf16.msra.mxu0 0
        %375 = vmatpush.bf16.msra.mxu0 0
        %376 = vmatpush.bf16.msra.mxu0 %v367
        %377 = vmatmul.bf16.gmra.mxu0 %v364
        %v378 = vpop.f32.mrf.mxu0
        %v379 = vadd.f32 0.0, %v378
        %v380 = vpop.f32.mrf.mxu0
        %381 = vdwg.mxu0
        %v382 = vadd.f32 %v357, %v379
        %v383 = vld [vmem:[%s303 + $0x4] sm:$0x3]
        %v384 = vld [vmem:[%s1 + $0xc] sm:$0xf]
        %v386 = vunpack.c.l.b16 %v383
        %v387 = vpack.c.b16 %v386, %v386
        %388 = vrot.lane.b32.xlu0 %v387, 117
        %v389 = vpop.permute.xlu0 %388
        %v391 = vsel %vm315, %v384, 0
        %v394 = vsel %vm319, %v389, 0
        %396 = vmatpush.bf16.msra.mxu0 0
        %397 = vmatpush.bf16.msra.mxu0 0
        %398 = vmatpush.bf16.msra.mxu0 0
        %399 = vmatpush.bf16.msra.mxu0 0
        %400 = vmatpush.bf16.msra.mxu0 0
        %401 = vmatpush.bf16.msra.mxu0 0
        %402 = vmatpush.bf16.msra.mxu0 0
        %403 = vmatpush.bf16.msra.mxu0 %v394
        %404 = vmatmul.bf16.gmra.mxu0 %v391
        %v405 = vpop.f32.mrf.mxu0
        %v406 = vadd.f32 0.0, %v405
        %v407 = vpop.f32.mrf.mxu0
        %408 = vdwg.mxu0
        %v409 = vadd.f32 %v382, %v406
        %v410 = vld [vmem:[%s303 + $0x4] sm:$0xc]
        %v411 = vld [vmem:[%s1 + $0x10] sm:$0xf]
        %v413 = vunpack.c.l.b16 %v410
        %v414 = vpack.c.b16 %v413, %v413
        %v415 = vrot.slane %v414, 2
        %416 = vrot.lane.b32.xlu0 %v415, 117
        %v417 = vpop.permute.xlu0 %416
        %v419 = vsel %vm315, %v411, 0
        %v422 = vsel %vm319, %v417, 0
        %424 = vmatpush.bf16.msra.mxu0 0
        %425 = vmatpush.bf16.msra.mxu0 0
        %426 = vmatpush.bf16.msra.mxu0 0
        %427 = vmatpush.bf16.msra.mxu0 0
        %428 = vmatpush.bf16.msra.mxu0 0
        %429 = vmatpush.bf16.msra.mxu0 0
        %430 = vmatpush.bf16.msra.mxu0 0
        %431 = vmatpush.bf16.msra.mxu0 %v422
        %432 = vmatmul.bf16.gmra.mxu0 %v419
        %v433 = vpop.f32.mrf.mxu0
        %v434 = vadd.f32 0.0, %v433
        %v435 = vpop.f32.mrf.mxu0
        %436 = vdwg.mxu0
        %v437 = vadd.f32 %v409, %v434
        %v438 = vld [vmem:[%s1 + $0x14] sm:$0xf]
        %439 = vrot.lane.b32.xlu0 %v387, 116
        %v440 = vpop.permute.xlu0 %439
        %v442 = vsel %vm315, %v438, 0
        %v445 = vsel %vm319, %v440, 0
        %447 = vmatpush.bf16.msra.mxu0 0
        %448 = vmatpush.bf16.msra.mxu0 0
        %449 = vmatpush.bf16.msra.mxu0 0
        %450 = vmatpush.bf16.msra.mxu0 0
        %451 = vmatpush.bf16.msra.mxu0 0
        %452 = vmatpush.bf16.msra.mxu0 0
        %453 = vmatpush.bf16.msra.mxu0 0
        %454 = vmatpush.bf16.msra.mxu0 %v445
        %455 = vmatmul.bf16.gmra.mxu0 %v442
        %v456 = vpop.f32.mrf.mxu0
        %v457 = vadd.f32 0.0, %v456
        %v458 = vpop.f32.mrf.mxu0
        %459 = vdwg.mxu0
        %v460 = vadd.f32 %v437, %v457
        %v461 = vld [vmem:[%s1 + $0x18] sm:$0xf]
        %462 = vrot.lane.b32.xlu0 %v338, 107
        %v463 = vpop.permute.xlu0 %462
        %v465 = vsel %vm315, %v461, 0
        %v468 = vsel %vm319, %v463, 0
        %470 = vmatpush.bf16.msra.mxu0 0
        %471 = vmatpush.bf16.msra.mxu0 0
        %472 = vmatpush.bf16.msra.mxu0 0
        %473 = vmatpush.bf16.msra.mxu0 0
        %474 = vmatpush.bf16.msra.mxu0 0
        %475 = vmatpush.bf16.msra.mxu0 0
        %476 = vmatpush.bf16.msra.mxu0 0
        %477 = vmatpush.bf16.msra.mxu0 %v468
        %478 = vmatmul.bf16.gmra.mxu0 %v465
        %v479 = vpop.f32.mrf.mxu0
        %v480 = vadd.f32 0.0, %v479
        %v481 = vpop.f32.mrf.mxu0
        %482 = vdwg.mxu0
        %v483 = vadd.f32 %v460, %v480
        %v484 = vld [vmem:[%s1 + $0x1c] sm:$0xf]
        %485 = vrot.lane.b32.xlu0 %v312, 107
        %v486 = vpop.permute.xlu0 %485
        %v488 = vsel %vm315, %v484, 0
        %v491 = vsel %vm319, %v486, 0
        %493 = vmatpush.bf16.msra.mxu0 0
        %494 = vmatpush.bf16.msra.mxu0 0
        %495 = vmatpush.bf16.msra.mxu0 0
        %496 = vmatpush.bf16.msra.mxu0 0
        %497 = vmatpush.bf16.msra.mxu0 0
        %498 = vmatpush.bf16.msra.mxu0 0
        %499 = vmatpush.bf16.msra.mxu0 0
        %500 = vmatpush.bf16.msra.mxu0 %v491
        %501 = vmatmul.bf16.gmra.mxu0 %v488
        %v502 = vpop.f32.mrf.mxu0
        %v503 = vadd.f32 0.0, %v502
        %v504 = vpop.f32.mrf.mxu0
        %505 = vdwg.mxu0
        %v506 = vadd.f32 %v483, %v503
        %v507 = vld [vmem:[%s1 + $0x20] sm:$0xf]
        %508 = vrot.lane.b32.xlu0 %v338, 106
        %v509 = vpop.permute.xlu0 %508
        %v511 = vsel %vm315, %v507, 0
        %v514 = vsel %vm319, %v509, 0
        %516 = vmatpush.bf16.msra.mxu0 0
        %517 = vmatpush.bf16.msra.mxu0 0
        %518 = vmatpush.bf16.msra.mxu0 0
        %519 = vmatpush.bf16.msra.mxu0 0
        %520 = vmatpush.bf16.msra.mxu0 0
        %521 = vmatpush.bf16.msra.mxu0 0
        %522 = vmatpush.bf16.msra.mxu0 0
        %523 = vmatpush.bf16.msra.mxu0 %v514
        %524 = vmatmul.bf16.gmra.mxu0 %v511
        %v525 = vpop.f32.mrf.mxu0
        %v526 = vadd.f32 0.0, %v525
        %v527 = vpop.f32.mrf.mxu0
        %528 = vdwg.mxu0
        %v529 = vadd.f32 %v506, %v526
        %v530 = vld [vmem:[%s2] sm:$0xff]
        %532 = vset.pattern.permute.xlu0 0
        %533 = vperm.xlu0 %532, %v530
        %v534 = vpop.permute.xlu0 %533
        %v536 = vadd.f32 %v529, %v534
        %v537 = vmax.f32 %v536, 0.0
        %v538 = vld [vmem:[%s5] sm:$0x1]
        %v540 = vperm.slane %v538, 0
        %v542 = vmul.f32 %v537, %v540
        %vm543 = vcmask 994304
        %544 = vst.msk [vmem:[#allocation2] sm:$0xf] %vm543, 0
        %v545 = vpack.c.bf16 %v542, %v542
        %547 = vrot.lane.b32.xlu0 %v545, 11
        %v548 = vpop.permute.xlu0 %547
        %vm550 = vcmask 904280
        %551 = vst.msk [vmem:[#allocation2] sm:$0xf] %vm550, %v548
        %v552 = vld [vmem:[#allocation2] sm:$0xf]
        %v553 = vld [vmem:[%s3] sm:$0xf]
        %v554 = vld [vmem:[%s3 + $0x4] sm:$0xf]
        %v556 = vunpack.c.l.b16 %v552
        %v557 = vpack.c.b16 %v556, %v556
        %558 = vrot.lane.b32.xlu0 %v557, 127
        %v559 = vpop.permute.xlu0 %558
        %vm560 = vcmask 64512
        %v562 = vsel %vm560, %v554, 0
        %vm564 = vcmask 1043456
        %v566 = vsel %vm564, %v559, 0
        %568 = vmatpush.bf16.msra.mxu0 0
        %569 = vmatpush.bf16.msra.mxu0 0
        %570 = vmatpush.bf16.msra.mxu0 0
        %571 = vmatpush.bf16.msra.mxu0 0
        %572 = vmatpush.bf16.msra.mxu0 0
        %573 = vmatpush.bf16.msra.mxu0 0
        %574 = vmatpush.bf16.msra.mxu0 0
        %575 = vmatpush.bf16.msra.mxu0 %v566
        %576 = vmatmul.bf16.gmra.mxu0 %v562
        %v577 = vpop.f32.mrf.mxu0
        %v578 = vadd.f32 0.0, %v577
        %v579 = vpop.f32.mrf.mxu0
        %580 = vdwg.mxu0
        %v582 = vsel %vm560, %v553, 0
        %v585 = vsel %vm564, %v552, 0
        %587 = vmatpush.bf16.msra.mxu0 0
        %588 = vmatpush.bf16.msra.mxu0 0
        %589 = vmatpush.bf16.msra.mxu0 0
        %590 = vmatpush.bf16.msra.mxu0 0
        %591 = vmatpush.bf16.msra.mxu0 0
        %592 = vmatpush.bf16.msra.mxu0 0
        %593 = vmatpush.bf16.msra.mxu0 0
        %594 = vmatpush.bf16.msra.mxu0 %v585
        %595 = vmatmul.bf16.gmra.mxu0 %v582
        %v596 = vpop.f32.mrf.mxu0
        %v597 = vadd.f32 %v578, %v596
        %v598 = vpop.f32.mrf.mxu0
        %599 = vdwg.mxu0
        %v600 = vld [vmem:[%s3 + $0x8] sm:$0xf]
        %601 = vrot.lane.b32.xlu0 %v557, 126
        %v602 = vpop.permute.xlu0 %601
        %v604 = vsel %vm560, %v600, 0
        %v607 = vsel %vm564, %v602, 0
        %609 = vmatpush.bf16.msra.mxu0 0
        %610 = vmatpush.bf16.msra.mxu0 0
        %611 = vmatpush.bf16.msra.mxu0 0
        %612 = vmatpush.bf16.msra.mxu0 0
        %613 = vmatpush.bf16.msra.mxu0 0
        %614 = vmatpush.bf16.msra.mxu0 0
        %615 = vmatpush.bf16.msra.mxu0 0
        %616 = vmatpush.bf16.msra.mxu0 %v607
        %617 = vmatmul.bf16.gmra.mxu0 %v604
        %v618 = vpop.f32.mrf.mxu0
        %v619 = vadd.f32 0.0, %v618
        %v620 = vpop.f32.mrf.mxu0
        %621 = vdwg.mxu0
        %v622 = vadd.f32 %v597, %v619
        %v623 = vld [vmem:[%s3 + $0xc] sm:$0xf]
        %624 = vrot.lane.b32.xlu0 %v557, 118
        %v625 = vpop.permute.xlu0 %624
        %v627 = vsel %vm560, %v623, 0
        %v630 = vsel %vm564, %v625, 0
        %632 = vmatpush.bf16.msra.mxu0 0
        %633 = vmatpush.bf16.msra.mxu0 0
        %634 = vmatpush.bf16.msra.mxu0 0
        %635 = vmatpush.bf16.msra.mxu0 0
        %636 = vmatpush.bf16.msra.mxu0 0
        %637 = vmatpush.bf16.msra.mxu0 0
        %638 = vmatpush.bf16.msra.mxu0 0
        %639 = vmatpush.bf16.msra.mxu0 %v630
        %640 = vmatmul.bf16.gmra.mxu0 %v627
        %v641 = vpop.f32.mrf.mxu0
        %v642 = vadd.f32 0.0, %v641
        %v643 = vpop.f32.mrf.mxu0
        %644 = vdwg.mxu0
        %v645 = vadd.f32 %v622, %v642
        %v646 = vld [vmem:[%s3 + $0x10] sm:$0xf]
        %647 = vrot.lane.b32.xlu0 %v557, 117
        %v648 = vpop.permute.xlu0 %647
        %v650 = vsel %vm560, %v646, 0
        %v653 = vsel %vm564, %v648, 0
        %655 = vmatpush.bf16.msra.mxu0 0
        %656 = vmatpush.bf16.msra.mxu0 0
        %657 = vmatpush.bf16.msra.mxu0 0
        %658 = vmatpush.bf16.msra.mxu0 0
        %659 = vmatpush.bf16.msra.mxu0 0
        %660 = vmatpush.bf16.msra.mxu0 0
        %661 = vmatpush.bf16.msra.mxu0 0
        %662 = vmatpush.bf16.msra.mxu0 %v653
        %663 = vmatmul.bf16.gmra.mxu0 %v650
        %v664 = vpop.f32.mrf.mxu0
        %v665 = vadd.f32 0.0, %v664
        %v666 = vpop.f32.mrf.mxu0
        %667 = vdwg.mxu0
        %v668 = vadd.f32 %v645, %v665
        %v669 = vld [vmem:[%s3 + $0x14] sm:$0xf]
        %670 = vrot.lane.b32.xlu0 %v557, 116
        %v671 = vpop.permute.xlu0 %670
        %v673 = vsel %vm560, %v669, 0
        %v676 = vsel %vm564, %v671, 0
        %678 = vmatpush.bf16.msra.mxu0 0
        %679 = vmatpush.bf16.msra.mxu0 0
        %680 = vmatpush.bf16.msra.mxu0 0
        %681 = vmatpush.bf16.msra.mxu0 0
        %682 = vmatpush.bf16.msra.mxu0 0
        %683 = vmatpush.bf16.msra.mxu0 0
        %684 = vmatpush.bf16.msra.mxu0 0
        %685 = vmatpush.bf16.msra.mxu0 %v676
        %686 = vmatmul.bf16.gmra.mxu0 %v673
        %v687 = vpop.f32.mrf.mxu0
        %v688 = vadd.f32 0.0, %v687
        %v689 = vpop.f32.mrf.mxu0
        %690 = vdwg.mxu0
        %v691 = vadd.f32 %v668, %v688
        %v692 = vld [vmem:[%s3 + $0x18] sm:$0xf]
        %693 = vrot.lane.b32.xlu0 %v557, 108
        %v694 = vpop.permute.xlu0 %693
        %v696 = vsel %vm560, %v692, 0
        %v699 = vsel %vm564, %v694, 0
        %701 = vmatpush.bf16.msra.mxu0 0
        %702 = vmatpush.bf16.msra.mxu0 0
        %703 = vmatpush.bf16.msra.mxu0 0
        %704 = vmatpush.bf16.msra.mxu0 0
        %705 = vmatpush.bf16.msra.mxu0 0
        %706 = vmatpush.bf16.msra.mxu0 0
        %707 = vmatpush.bf16.msra.mxu0 0
        %708 = vmatpush.bf16.msra.mxu0 %v699
        %709 = vmatmul.bf16.gmra.mxu0 %v696
        %v710 = vpop.f32.mrf.mxu0
        %v711 = vadd.f32 0.0, %v710
        %v712 = vpop.f32.mrf.mxu0
        %713 = vdwg.mxu0
        %v714 = vadd.f32 %v691, %v711
        %v715 = vld [vmem:[%s3 + $0x1c] sm:$0xf]
        %716 = vrot.lane.b32.xlu0 %v557, 107
        %v717 = vpop.permute.xlu0 %716
        %v719 = vsel %vm560, %v715, 0
        %v722 = vsel %vm564, %v717, 0
        %724 = vmatpush.bf16.msra.mxu0 0
        %725 = vmatpush.bf16.msra.mxu0 0
        %726 = vmatpush.bf16.msra.mxu0 0
        %727 = vmatpush.bf16.msra.mxu0 0
        %728 = vmatpush.bf16.msra.mxu0 0
        %729 = vmatpush.bf16.msra.mxu0 0
        %730 = vmatpush.bf16.msra.mxu0 0
        %731 = vmatpush.bf16.msra.mxu0 %v722
        %732 = vmatmul.bf16.gmra.mxu0 %v719
        %v733 = vpop.f32.mrf.mxu0
        %v734 = vadd.f32 0.0, %v733
        %v735 = vpop.f32.mrf.mxu0
        %736 = vdwg.mxu0
        %v737 = vadd.f32 %v714, %v734
        %v738 = vld [vmem:[%s3 + $0x20] sm:$0xf]
        %739 = vrot.lane.b32.xlu0 %v557, 106
        %v740 = vpop.permute.xlu0 %739
        %v742 = vsel %vm560, %v738, 0
        %v745 = vsel %vm564, %v740, 0
        %747 = vmatpush.bf16.msra.mxu0 0
        %748 = vmatpush.bf16.msra.mxu0 0
        %749 = vmatpush.bf16.msra.mxu0 0
        %750 = vmatpush.bf16.msra.mxu0 0
        %751 = vmatpush.bf16.msra.mxu0 0
        %752 = vmatpush.bf16.msra.mxu0 0
        %753 = vmatpush.bf16.msra.mxu0 0
        %754 = vmatpush.bf16.msra.mxu0 %v745
        %755 = vmatmul.bf16.gmra.mxu0 %v742
        %v756 = vpop.f32.mrf.mxu0
        %v757 = vadd.f32 0.0, %v756
        %v758 = vpop.f32.mrf.mxu0
        %759 = vdwg.mxu0
        %v760 = vadd.f32 %v737, %v757
        %v761 = vld [vmem:[%s4] sm:$0xff]
        %763 = vset.pattern.permute.xlu0 0
        %764 = vperm.xlu0 %763, %v761
        %v765 = vpop.permute.xlu0 %764
        %v767 = vadd.f32 %v760, %v765
        %v768 = vld [vmem:[%s303 + $0x4] sm:$0xc]
        %v769 = vld [vmem:[%s6] sm:$0xf]
        %v771 = vunpack.c.l.b16 %v768
        %v772 = vpack.c.b16 %v771, %v771
        %v773 = vrot.slane %v772, 2
        %774 = vrot.lane.b32.xlu0 %v773, 117
        %v775 = vpop.permute.xlu0 %774
        %v777 = vsel %vm315, %v769, 0
        %v780 = vsel %vm319, %v775, 0
        %782 = vmatpush.bf16.msra.mxu0 0
        %783 = vmatpush.bf16.msra.mxu0 0
        %784 = vmatpush.bf16.msra.mxu0 0
        %785 = vmatpush.bf16.msra.mxu0 0
        %786 = vmatpush.bf16.msra.mxu0 0
        %787 = vmatpush.bf16.msra.mxu0 0
        %788 = vmatpush.bf16.msra.mxu0 0
        %789 = vmatpush.bf16.msra.mxu0 %v780
        %790 = vmatmul.bf16.gmra.mxu0 %v777
        %v791 = vpop.f32.mrf.mxu0
        %v792 = vadd.f32 0.0, %v791
        %v793 = vpop.f32.mrf.mxu0
        %794 = vdwg.mxu0
        %v795 = vadd.f32 %v767, %v792
        %v796 = vld [vmem:[%s7] sm:$0xff]
        %798 = vset.pattern.permute.xlu0 0
        %799 = vperm.xlu0 %798, %v796
        %v800 = vpop.permute.xlu0 %799
        %v802 = vadd.f32 %v795, %v800
        %v803 = vmax.f32 %v802, 0.0
        %vm804 = vcmask 818176
        %805 = vst.msk [vmem:[%s298] sm:$0xff] %vm804, %v803
        %s806 = sand.u32 %s203, 1
        %s807 = scalar_lea.sflag [#allocation4], %s806
        %s808 = sand.u32 %s203, 1
        %s809 = smul.addr %s808, 8
        %s810 = scalar_lea.vmem [#allocation3], %s809
        // Predicated region
        $region53: #{tpu_custom_call.1} parent=51 // pred_check
          %p811 = pneg %p213
        $region54: #{tpu_custom_call.1} parent=51 // pred_check_branch
          %813 = sbr.rel (%p811) target = $region56
        $region55: #{tpu_custom_call.1} parent=51 // pred_region
          %815 = vsyncadd %s807, 0
          %s816 = smul.addr %s22, 8
          %s817 = scalar_lea.hbm %s8, %s816
          %s819 = sshll.u32 %s810, 4
          %s820 = int_to_ptr.vmem [resolvable:$true] %s819
          %s821 = sshll.u32 %s817, 4
          %s822 = int_to_ptr.hbm [resolvable:$true] %s821
          %824 = dma.vmem_to_hbm [thread:$0]  %s820, 128, %s822, %s807
        $region56: #{tpu_custom_call.1} parent=51 // pred_fallthru
          _
      $region52: #{tpu_custom_call.1} parent=5 // pred_fallthru
        _
      %p825 = scmp.le.s32.totalorder 2, %s17
      // Predicated region
      $region57: #{tpu_custom_call.1} parent=5 // pred_check
        %p826 = pneg %p825
      $region58: #{tpu_custom_call.1} parent=5 // pred_check_branch
        %828 = sbr.rel (%p826) target = $region60
      $region59: #{tpu_custom_call.1} parent=5 // pred_region
        %s829 = ssub.s32 %s17, 2
        // Predicated region
        $region61: #{tpu_custom_call.1} parent=59 // pred_check
          %p830 = pneg %p219
        $region62: #{tpu_custom_call.1} parent=59 // pred_check_branch
          %832 = sbr.rel (%p830) target = $region64
        $region63: #{tpu_custom_call.1} parent=59 // pred_region
          %s833 = sand.u32 %s204, 1
          %s834 = scalar_lea.sflag [#allocation4], %s833
          %s835 = sand.u32 %s204, 1
          %s836 = smul.addr %s835, 8
          %s837 = scalar_lea.vmem [#allocation3], %s836
          %839 = dma.done %s834, 128
        $region64: #{tpu_custom_call.1} parent=59 // pred_fallthru
          _
      $region60: #{tpu_custom_call.1} parent=5 // pred_fallthru
        _
    $region6: #{tpu_custom_call.1} parent=1 // loop_footer
      %s21 = sadd.s32 1, %s17
    $region7: #{tpu_custom_call.1} parent=1 // loop_footer_branch
      %16 = sbr.rel target = $region3
    $region8: #{tpu_custom_call.1} parent=1 // loop_exit
      _
    %840 = vsyncpa [#allocation4], 1
    %s841 = scalar_lea.sflag [#allocation4], 1
    %842 = vsyncpa %s841, 1

</llo_original>
